<compile_context>
chip_gen: v6e
topology: v6e:2x2x1
jax: 0.10.0
libtpu: 0.0.40
codegen_flags: <defaults>
</compile_context>

<pallas_src>
import jax
import jax.numpy as jnp
from jax.experimental import pallas as pl
from jax.experimental.pallas import tpu as pltpu

_EPS = 1e-5


# ---------------------------------------------------------------------------
# Kernel bodies
# ---------------------------------------------------------------------------
def _ln_core(x_orig, w, b, bias_free, out_dtype):
    """x_orig: (C, TS) in I/O dtype; w/b: (C, 1) f32. Normalize over axis 0."""
    x = x_orig.astype(jnp.float32)
    c = x.shape[0]
    inv_c = jnp.float32(1.0 / c)
    # Two-pass (mean-shifted) statistics: safe against cancellation, and the
    # centered tensor d is reused for the WithBias output.
    mu = jnp.sum(x, axis=0, keepdims=True) * inv_c               # (1, TS)
    d = x - mu                                                   # (C, TS)
    var = jnp.sum(d * d, axis=0, keepdims=True) * inv_c          # (1, TS)
    inv = jax.lax.rsqrt(var + _EPS)                              # EUP

    if jnp.dtype(out_dtype) == jnp.dtype(jnp.bfloat16):
        # bf16 I/O: do the affine in bf16 (2 elems per vreg lane); stats stay f32.
        invb = inv.astype(jnp.bfloat16)
        wb = w.astype(jnp.bfloat16)
        if bias_free:
            return (x_orig.astype(jnp.bfloat16) * invb) * wb
        mub = mu.astype(jnp.bfloat16)
        bb = b.astype(jnp.bfloat16)
        return ((x_orig.astype(jnp.bfloat16) - mub) * invb) * wb + bb

    if bias_free:
        # Matches Restormer's BiasFree_LayerNorm exactly: x is NOT mean-
        # subtracted even though the variance is computed about the mean.
        return (x * inv * w).astype(out_dtype)
    return (d * inv * w + b).astype(out_dtype)


def _ln_withbias_kernel(w_ref, b_ref, x_ref, o_ref):
    o_ref[...] = _ln_core(x_ref[...], w_ref[...].astype(jnp.float32),
                          b_ref[...].astype(jnp.float32),
                          bias_free=False, out_dtype=o_ref.dtype)


def _ln_biasfree_kernel(w_ref, x_ref, o_ref):
    o_ref[...] = _ln_core(x_ref[...], w_ref[...].astype(jnp.float32), None,
                          bias_free=True, out_dtype=o_ref.dtype)


# ---------------------------------------------------------------------------
# Tile sizing
# ---------------------------------------------------------------------------
def _device_kind():
    try:
        return jax.devices()[0].device_kind.lower()
    except Exception:  # pragma: no cover - defensive
        return ""


def _pick_spatial_tile(S, C, itemsize, B):
    """Byte-targeted lane tile: multiple of 128, prefers exact divisors of S."""
    kind = _device_kind()
    if "v7" in kind:
        target_bytes, vmem_limit = 6 << 20, 48 << 20   # 64 MiB physical VMEM / TC
    elif "v6" in kind:
        target_bytes, vmem_limit = 3 << 20, 64 << 20   # 128 MiB physical VMEM
    elif "v5" in kind:
        target_bytes, vmem_limit = 2 << 20, 64 << 20   # 128 MiB physical VMEM
    else:
        target_bytes, vmem_limit = 3 << 20, 48 << 20   # conservative default

    # Bytes per lane-column resident in VMEM at once:
    #   2x input + 2x output double buffers (I/O dtype) + ~2 f32 working tiles
    #   inside the kernel (upcast and centered copy).
    per_col = 4 * itemsize * C + 8 * C
    if S > 128 and 128 * per_col > vmem_limit // 2:
        raise ValueError(
            f"C={C} is too large for a single-pass LayerNorm tile within the "
            f"VMEM budget; tile the channel axis instead.")

    budget_cols = (vmem_limit // 2) // per_col           # leave pipeline headroom
    target_cols = max(128, target_bytes // max(1, C * itemsize))
    cap = max(1, min(S, budget_cols, target_cols))

    def pick(cap_cols):
        cap_cols = max(1, min(cap_cols, S))
        if S <= 128:
            return S                                     # full block (== array dim)
        if S % 128 == 0:
            for k in range(cap_cols // 128, 0, -1):
                t = 128 * k
                if S % t == 0:                           # no partial last block
                    return t
            return 128
        if S <= cap_cols:
            return S                                     # single full block, no mask
        return max(128, (cap_cols // 128) * 128)         # masked last block

    ts = pick(cap)
    # Keep >= 2 grid steps when B == 1 so both v7x TensorCores get work.
    if B == 1 and -(-S // ts) < 2 and S >= 256:
        ts = pick(max(128, S // 2))
    return ts, vmem_limit


# ---------------------------------------------------------------------------
# Wrapper
# ---------------------------------------------------------------------------
def restormer_layernorm(x, weight, bias=None, layernorm_type="WithBias",
                        spatial_tile=None):
    """x: (B, C, H, W) NCHW, weight/bias: (C,). Returns (B, C, H, W)."""
    B, C, H, W = x.shape
    S = H * W
    bias_free = (layernorm_type == "BiasFree")

    # Free reshape: NCHW is contiguous as (B, C, H*W). Spatial on lanes.
    x3 = x.reshape(B, C, S)

    if spatial_tile is None:
        ts, vmem_limit = _pick_spatial_tile(S, C, jnp.dtype(x.dtype).itemsize, B)
    else:
        ts, vmem_limit = spatial_tile, 48 << 20
    n_spatial = pl.cdiv(S, ts)
    grid = (B, n_spatial)

    # Affine params stay in f32 and are DMA'd once (constant index_map).
    w2 = weight.reshape(C, 1).astype(jnp.float32)

    # Triple-buffer only in the tiny-tile / large-C regime with a long enough
    # pipeline; irrelevant (and skipped) once tiles are large.
    if ts <= 256 and B * n_spatial >= 4:
        x_spec = pl.BlockSpec((None, C, ts), lambda b, s: (b, 0, s),
                              pipeline_mode=pl.Buffered(3))
        out_spec = pl.BlockSpec((None, C, ts), lambda b, s: (b, 0, s),
                                pipeline_mode=pl.Buffered(3))
    else:
        x_spec = pl.BlockSpec((None, C, ts), lambda b, s: (b, 0, s))
        out_spec = pl.BlockSpec((None, C, ts), lambda b, s: (b, 0, s))
    p_spec = pl.BlockSpec((C, 1), lambda b, s: (0, 0))

    if bias_free:
        kernel = _ln_biasfree_kernel
        in_specs = [p_spec, x_spec]
        args = (w2, x3)
    else:
        b2 = bias.reshape(C, 1).astype(jnp.float32)
        kernel = _ln_withbias_kernel
        in_specs = [p_spec, p_spec, x_spec]
        args = (w2, b2, x3)

    out3 = pl.pallas_call(
        kernel,
        out_shape=jax.ShapeDtypeStruct((B, C, S), x.dtype),
        grid_spec=pltpu.PrefetchScalarGridSpec(
            num_scalar_prefetch=0,
            grid=grid,
            in_specs=in_specs,
            out_specs=out_spec,
        ),
        compiler_params=pltpu.CompilerParams(
            dimension_semantics=("parallel", "parallel"),
            vmem_limit_bytes=vmem_limit,
        ),
    )(*args)

    # Free reshape back to NCHW.
    return out3.reshape(B, C, H, W)


# ---------------------------------------------------------------------------
# Pure-JAX reference mirroring the PyTorch forward.
# ---------------------------------------------------------------------------
def _reference(x, weight, bias, layernorm_type):
    B, C, H, W = x.shape
    x3 = jnp.transpose(x, (0, 2, 3, 1)).reshape(B, H * W, C).astype(jnp.float32)
    mu = jnp.mean(x3, axis=-1, keepdims=True)
    var = jnp.mean((x3 - mu) ** 2, axis=-1, keepdims=True)
    if layernorm_type == "BiasFree":
        y = x3 / jnp.sqrt(var + _EPS) * weight
    else:
        y = (x3 - mu) / jnp.sqrt(var + _EPS) * weight + bias
    return jnp.transpose(y.reshape(B, H, W, C), (0, 3, 1, 2)).astype(x.dtype)


if __name__ == "__main__":
    key = jax.random.PRNGKey(0)
    B, C, H, W = 2, 4, 16, 16
    x = jax.random.normal(key, (B, C, H, W), dtype=jnp.float32)

    # Deterministic parameter init (matches nn.Parameter(ones)/(zeros)).
    weight = jnp.ones((C,), dtype=jnp.float32)
    bias = jnp.zeros((C,), dtype=jnp.float32)

    # WithBias (default branch when LayerNorm_type != 'BiasFree').
    out = restormer_layernorm(x, weight, bias, layernorm_type="WithBias")
    out = jax.block_until_ready(out)
    ref = _reference(x, weight, bias, "WithBias")
    assert out.shape == (B, C, H, W)
    assert jnp.max(jnp.abs(out - ref)) < 1e-4

    # BiasFree variant.
    out_bf = restormer_layernorm(x, weight, bias, layernorm_type="BiasFree")
    out_bf = jax.block_until_ready(out_bf)
    ref_bf = _reference(x, weight, bias, "BiasFree")
    assert jnp.max(jnp.abs(out_bf - ref_bf)) < 1e-4

    print("KERNEL_OK")
</pallas_src>

<mosaic_0001>
module attributes {stable_mosaic.version = 11 : i64} {
  func.func @_ln_withbias_kernel(%arg0: i32, %arg1: i32, %arg2: memref<4x1xf32, #tpu.memory_space<vmem>>, %arg3: memref<4x1xf32, #tpu.memory_space<vmem>>, %arg4: memref<1x4x256xf32, #tpu.memory_space<vmem>>, %arg5: memref<1x4x256xf32, #tpu.memory_space<vmem>>) attributes {dimension_semantics = [#tpu.dimension_semantics<parallel>, #tpu.dimension_semantics<parallel>], iteration_bounds = array<i64: 2, 1>, scalar_prefetch = 0 : i64, scratch_operands = 0 : i64, tpu.core_type = #tpu.core_type<tc>, window_params = [{pipeline_mode = #tpu.pipeline_mode<synchronous>, transform_indices = @transform_0, window_bounds = array<i64: 4, 1>}, {pipeline_mode = #tpu.pipeline_mode<synchronous>, transform_indices = @transform_1, window_bounds = array<i64: 4, 1>}, {transform_indices = @transform_2, window_bounds = array<i64: 1, 4, 256>}, {transform_indices = @transform_3, window_bounds = array<i64: 1, 4, 256>}]} {
    %c0 = arith.constant 0 : index
    %c0_0 = arith.constant 0 : index
    %c0_1 = arith.constant 0 : index
    %0 = vector.load %arg4[%c0, %c0_0, %c0_1] : memref<1x4x256xf32, #tpu.memory_space<vmem>>, vector<1x4x256xf32>
    %1 = vector.shape_cast %0 : vector<1x4x256xf32> to vector<4x256xf32>
    %c0_2 = arith.constant 0 : index
    %c0_3 = arith.constant 0 : index
    %2 = vector.load %arg2[%c0_2, %c0_3] : memref<4x1xf32, #tpu.memory_space<vmem>>, vector<4x1xf32>
    %c0_4 = arith.constant 0 : index
    %c0_5 = arith.constant 0 : index
    %3 = vector.load %arg3[%c0_4, %c0_5] : memref<4x1xf32, #tpu.memory_space<vmem>>, vector<4x1xf32>
    %cst = arith.constant dense<0.000000e+00> : vector<256xf32>
    %4 = vector.multi_reduction <add>, %1, %cst [0] : vector<4x256xf32> to vector<256xf32>
    %5 = vector.shape_cast %4 : vector<256xf32> to vector<1x256xf32>
    %cst_6 = arith.constant 2.500000e-01 : f32
    %6 = vector.broadcast %cst_6 : f32 to vector<1x256xf32>
    %7 = arith.mulf %5, %6 : vector<1x256xf32>
    %8 = vector.broadcast %7 : vector<1x256xf32> to vector<4x256xf32>
    %9 = arith.subf %1, %8 : vector<4x256xf32>
    %10 = arith.mulf %9, %9 : vector<4x256xf32>
    %cst_7 = arith.constant dense<0.000000e+00> : vector<256xf32>
    %11 = vector.multi_reduction <add>, %10, %cst_7 [0] : vector<4x256xf32> to vector<256xf32>
    %12 = vector.shape_cast %11 : vector<256xf32> to vector<1x256xf32>
    %cst_8 = arith.constant 2.500000e-01 : f32
    %13 = vector.broadcast %cst_8 : f32 to vector<1x256xf32>
    %14 = arith.mulf %12, %13 : vector<1x256xf32>
    %cst_9 = arith.constant 9.99999974E-6 : f32
    %15 = vector.broadcast %cst_9 : f32 to vector<1x256xf32>
    %16 = arith.addf %14, %15 : vector<1x256xf32>
    %17 = math.rsqrt %16 : vector<1x256xf32>
    %18 = vector.broadcast %17 : vector<1x256xf32> to vector<4x256xf32>
    %19 = arith.mulf %9, %18 : vector<4x256xf32>
    %20 = vector.broadcast %2 : vector<4x1xf32> to vector<4x256xf32>
    %21 = arith.mulf %19, %20 : vector<4x256xf32>
    %22 = vector.broadcast %3 : vector<4x1xf32> to vector<4x256xf32>
    %23 = arith.addf %21, %22 : vector<4x256xf32>
    %c0_10 = arith.constant 0 : index
    %c0_11 = arith.constant 0 : index
    %c0_12 = arith.constant 0 : index
    %24 = vector.load %arg5[%c0_10, %c0_11, %c0_12] : memref<1x4x256xf32, #tpu.memory_space<vmem>>, vector<1x4x256xf32>
    %25 = vector.shape_cast %24 : vector<1x4x256xf32> to vector<4x256xf32>
    %26 = vector.shape_cast %23 : vector<4x256xf32> to vector<1x4x256xf32>
    tpu.vector_store %arg5[%c0_10, %c0_11, %c0_12], %26 {strides = array<i32>} : memref<1x4x256xf32, #tpu.memory_space<vmem>>, vector<1x4x256xf32>,
    return
  }
  func.func @transform_0(%arg0: i32, %arg1: i32) -> (i32, i32) {
    %c0_i32 = arith.constant 0 : i32
    %c0_i32_0 = arith.constant 0 : i32
    %c0_i32_1 = arith.constant 0 : i32
    return %c0_i32, %c0_i32_0 : i32, i32
  }
  func.func @transform_1(%arg0: i32, %arg1: i32) -> (i32, i32) {
    %c0_i32 = arith.constant 0 : i32
    %c0_i32_0 = arith.constant 0 : i32
    %c0_i32_1 = arith.constant 0 : i32
    return %c0_i32, %c0_i32_0 : i32, i32
  }
  func.func @transform_2(%arg0: i32, %arg1: i32) -> (i32, i32, i32) {
    %c0_i32 = arith.constant 0 : i32
    %c0_i32_0 = arith.constant 0 : i32
    return %arg0, %c0_i32, %arg1 : i32, i32, i32
  }
  func.func @transform_3(%arg0: i32, %arg1: i32) -> (i32, i32, i32) {
    %c0_i32 = arith.constant 0 : i32
    %c0_i32_0 = arith.constant 0 : i32
    return %arg0, %c0_i32, %arg1 : i32, i32, i32
  }
}

</mosaic_0001>

<llo_original>
// kernel: tpu_custom_call.1
$region0: #{tpu_custom_call.1}
  #allocation0 [shape = 'u32[]', space=smem, size = 0x4, offset = 0x4, fixed_abs, tag = 'smem constant byte address 0x4 - core index']
  #allocation1 [shape = 'u32[144,128]{1,0:T(1,128)}', space=vmem, size = 0x12000, scoped, tag = 'internal scratch']
  %s0 = inlined_call_operand.vmem [shape: f32[4,1], index: 0, kind: input, shape index: {}]
  %s1 = inlined_call_operand.vmem [shape: f32[4,1], index: 1, kind: input, shape index: {}]
  %s2 = inlined_call_operand.hbm [shape: f32[2,4,256], index: 2, kind: input, shape index: {}]
  %s3 = inlined_call_operand.hbm [shape: f32[2,4,256], index: 3, kind: output, shape index: {}]
  %s4 = sld [smem:[#allocation0]]
  $region49: #{tpu_custom_call.1} parent=0
    _
  %s6 = ssub.s32 1, %s4
  %s7 = scalar_select 0, %s6, %s4
  $region1: #{tpu_custom_call.1} parent=0
    #allocation2 [shape = 'u8[8192]{0}', space=vmem, size = 0x2000, scoped, tag = 'input window, operand 2']
    #allocation3 [shape = 's32[2]{0}', space=sflag, size = 0x8, scoped, tag = 'scoped memory for tpu_custom_call.1']
    #allocation4 [shape = 's32[2]{0}', space=sflag, size = 0x8, scoped, tag = 'scoped memory for tpu_custom_call.1']
    #allocation5 [shape = 'u8[8192]{0}', space=vmem, size = 0x2000, scoped, tag = 'output window, operand 0']
    %8 = vsyncpa [#allocation3], 0
    %s9 = scalar_lea.sflag [#allocation3], 1
    %10 = vsyncpa %s9, 0
    %11 = vsyncpa [#allocation4], 0
    %s12 = scalar_lea.sflag [#allocation4], 1
    %13 = vsyncpa %s12, 0
    loop: start=0, step=1, limit=4
    $region2: #{tpu_custom_call.1} parent=1 // loop_pre_header
      _
    $region3: #{tpu_custom_call.1} parent=1 // loop_header
      %s15 = sphi 0, %s19
      %p16 = scmp.ge.s32.totalorder %s15, 4
      %s22 = sphi 0, %s34
      %s23 = sphi 0, %s30
      %s24 = sphi 0, %s22
      %s25 = sphi 0, %s23
      %s26 = sphi 0, %s24
      %s27 = sphi 0, %s25
      %s35 = sphi 0, %s35
      %s37 = sphi 0, %s35
      %s38 = sphi 0, %s37
      %s52 = sphi 0, %s38
      %s56 = sphi 0, %s56
      %s58 = sphi 0, %s56
      %s59 = sphi 0, %s58
      %s73 = sphi 0, %s59
      %s81 = sphi 0, %s83
      %s84 = sphi 0, %s81
      %s85 = sphi 0, %s84
      %s101 = sphi 0, %s85
      %s109 = sphi 0, %s111
      %s112 = sphi 0, %s109
      %s113 = sphi 0, %s112
      %s129 = sphi 0, %s113
    $region4: #{tpu_custom_call.1} parent=1 // loop_header_branch
      %18 = sbr.rel (%p16) target = $region8
    $region5: #{tpu_custom_call.1} parent=1 // loop_body
      %s20 = ssub.s32 %s15, 1
      %s21 = ssub.s32 %s15, 2
      %s28 = sadd.s32 1, %s23
      %p29 = scmp.ge.s32.totalorder %s28, 1
      %s30 = scalar_select %p29, 0, %s28
      %s31 = sadd.s32 1, %s22
      %s32 = scalar_select %p29, %s31, %s22
      %p33 = scmp.ge.s32.totalorder %s32, 2
      %s34 = scalar_select %p33, 0, %s32
      %s36 = sadd.s32 %s35, 1
      %p39 = scmp.eq.s32.totalorder %s15, 1
      %p40 = scmp.ne.s32.totalorder %s35, %s37
      %p41 = scmp.eq.s32.totalorder %s15, 0
      %p42 = por %p40, %p41
      %p43 = scmp.ne.s32.totalorder %s35, %s37
      %p44 = scmp.eq.s32.totalorder %s20, 1
      %p45 = por %p43, %p44
      %p46 = scmp.ne.s32.totalorder %s37, %s38
      %p47 = scmp.eq.s32.totalorder %s20, 0
      %p48 = por %p46, %p47
      %p49 = scmp.ne.s32.totalorder %s37, %s38
      %p50 = scmp.eq.s32.totalorder %s21, 1
      %p51 = por %p49, %p50
      %p53 = scmp.ne.s32.totalorder %s38, %s52
      %p54 = scmp.eq.s32.totalorder %s21, 0
      %p55 = por %p53, %p54
      %s57 = sadd.s32 %s56, 1
      %p60 = scmp.eq.s32.totalorder %s15, 1
      %p61 = scmp.ne.s32.totalorder %s56, %s58
      %p62 = scmp.eq.s32.totalorder %s15, 0
      %p63 = por %p61, %p62
      %p64 = scmp.ne.s32.totalorder %s56, %s58
      %p65 = scmp.eq.s32.totalorder %s20, 1
      %p66 = por %p64, %p65
      %p67 = scmp.ne.s32.totalorder %s58, %s59
      %p68 = scmp.eq.s32.totalorder %s20, 0
      %p69 = por %p67, %p68
      %p70 = scmp.ne.s32.totalorder %s58, %s59
      %p71 = scmp.eq.s32.totalorder %s21, 1
      %p72 = por %p70, %p71
      %p74 = scmp.ne.s32.totalorder %s59, %s73
      %p75 = scmp.eq.s32.totalorder %s21, 0
      %p76 = por %p74, %p75
      %s77 = ssub.s32 %s22, %s34
      %s78 = ssub.s32 %s23, %s30
      %s79 = sor.u32 %s77, %s78
      %p80 = scmp.eq.s32.totalorder %s79, 0
      %s82 = sadd.s32 %s81, 1
      %s83 = scalar_select %p80, %s81, %s82
      %p86 = pneg %p80
      %p87 = scmp.eq.s32.totalorder %s15, 1
      %p88 = por %p86, %p87
      %p89 = scmp.ne.s32.totalorder %s81, %s84
      %p90 = scmp.eq.s32.totalorder %s15, 0
      %p91 = por %p89, %p90
      %p92 = scmp.ne.s32.totalorder %s81, %s84
      %p93 = scmp.eq.s32.totalorder %s20, 1
      %p94 = por %p92, %p93
      %p95 = scmp.ne.s32.totalorder %s84, %s85
      %p96 = scmp.eq.s32.totalorder %s20, 0
      %p97 = por %p95, %p96
      %p98 = scmp.ne.s32.totalorder %s84, %s85
      %p99 = scmp.eq.s32.totalorder %s21, 1
      %p100 = por %p98, %p99
      %p102 = scmp.ne.s32.totalorder %s85, %s101
      %p103 = scmp.eq.s32.totalorder %s21, 0
      %p104 = por %p102, %p103
      %s105 = ssub.s32 %s22, %s34
      %s106 = ssub.s32 %s23, %s30
      %s107 = sor.u32 %s105, %s106
      %p108 = scmp.eq.s32.totalorder %s107, 0
      %s110 = sadd.s32 %s109, 1
      %s111 = scalar_select %p108, %s109, %s110
      %p114 = pneg %p108
      %p115 = scmp.eq.s32.totalorder %s15, 1
      %p116 = por %p114, %p115
      %p117 = scmp.ne.s32.totalorder %s109, %s112
      %p118 = scmp.eq.s32.totalorder %s15, 0
      %p119 = por %p117, %p118
      %p120 = scmp.ne.s32.totalorder %s109, %s112
      %p121 = scmp.eq.s32.totalorder %s20, 1
      %p122 = por %p120, %p121
      %p123 = scmp.ne.s32.totalorder %s112, %s113
      %p124 = scmp.eq.s32.totalorder %s20, 0
      %p125 = por %p123, %p124
      %p126 = scmp.ne.s32.totalorder %s112, %s113
      %p127 = scmp.eq.s32.totalorder %s21, 1
      %p128 = por %p126, %p127
      %p130 = scmp.ne.s32.totalorder %s113, %s129
      %p131 = scmp.eq.s32.totalorder %s21, 0
      %p132 = por %p130, %p131
      %p133 = scmp.le.s32.totalorder 1, %s15
      %p134 = scmp.lt.s32.totalorder %s15, 3
      %p135 = pnand %p133, %p134
      %p136 = pneg %p135
      // Predicated region
      $region9: #{tpu_custom_call.1} parent=5 // pred_check
        _
      $region10: #{tpu_custom_call.1} parent=5 // pred_check_branch
        %138 = sbr.rel (%p135) target = $region12
      $region11: #{tpu_custom_call.1} parent=5 // pred_region
        %s139 = ssub.s32 %s15, 1
        // Predicated region
        $region13: #{tpu_custom_call.1} parent=11 // pred_check
          %p140 = pneg %p48
        $region14: #{tpu_custom_call.1} parent=11 // pred_check_branch
          %142 = sbr.rel (%p140) target = $region16
        $region15: #{tpu_custom_call.1} parent=11 // pred_region
          _
        $region16: #{tpu_custom_call.1} parent=11 // pred_fallthru
          _
        // Predicated region
        $region17: #{tpu_custom_call.1} parent=11 // pred_check
          %p143 = pneg %p69
        $region18: #{tpu_custom_call.1} parent=11 // pred_check_branch
          %145 = sbr.rel (%p143) target = $region20
        $region19: #{tpu_custom_call.1} parent=11 // pred_region
          _
        $region20: #{tpu_custom_call.1} parent=11 // pred_fallthru
          _
      $region12: #{tpu_custom_call.1} parent=5 // pred_fallthru
        _
      %p146 = scmp.lt.s32.totalorder %s15, 2
      // Predicated region
      $region21: #{tpu_custom_call.1} parent=5 // pred_check
        %p147 = pneg %p146
      $region22: #{tpu_custom_call.1} parent=5 // pred_check_branch
        %149 = sbr.rel (%p147) target = $region24
      $region23: #{tpu_custom_call.1} parent=5 // pred_region
        // Predicated region
        $region25: #{tpu_custom_call.1} parent=23 // pred_check
          %p150 = pneg %p91
        $region26: #{tpu_custom_call.1} parent=23 // pred_check_branch
          %152 = sbr.rel (%p150) target = $region28
        $region27: #{tpu_custom_call.1} parent=23 // pred_region
          %s153 = sand.u32 %s81, 1
          %s154 = scalar_lea.sflag [#allocation3], %s153
          %s155 = sand.u32 %s81, 1
          %s156 = smul.addr %s155, 8
          %s157 = scalar_lea.vmem [#allocation2], %s156
          %s158 = smul.u32 2, %s23
          %s160 = ssub.s32 128, 128
          %161 = vsyncadd %s154, %s160
          %s162 = smul.addr %s22, 2
          %s163 = sadd.s32 %s158, %s162
          %s164 = smul.addr %s163, 64
          %s165 = scalar_lea.hbm %s2, %s164
          %s167 = sshll.u32 %s157, 4
          %s168 = int_to_ptr.vmem [resolvable:$true] %s167
          %170 = dma.hbm_to_vmem [thread:$0]  %s165, 128, %s168, %s154
        $region28: #{tpu_custom_call.1} parent=23 // pred_fallthru
          _
      $region24: #{tpu_custom_call.1} parent=5 // pred_fallthru
        _
      %p171 = scmp.le.s32.totalorder 1, %s15
      %p172 = scmp.lt.s32.totalorder %s15, 3
      %p173 = pnand %p171, %p172
      %p174 = pneg %p173
      // Predicated region
      $region29: #{tpu_custom_call.1} parent=5 // pred_check
        _
      $region30: #{tpu_custom_call.1} parent=5 // pred_check_branch
        %176 = sbr.rel (%p173) target = $region32
      $region31: #{tpu_custom_call.1} parent=5 // pred_region
        %s177 = ssub.s32 %s15, 1
        %s178 = sand.u32 %s84, 1
        %s179 = scalar_lea.sflag [#allocation3], %s178
        %s180 = sand.u32 %s84, 1
        %s181 = smul.addr %s180, 8
        %s182 = scalar_lea.vmem [#allocation2], %s181
        // Predicated region
        $region33: #{tpu_custom_call.1} parent=31 // pred_check
          %p183 = pneg %p97
        $region34: #{tpu_custom_call.1} parent=31 // pred_check_branch
          %185 = sbr.rel (%p183) target = $region36
        $region35: #{tpu_custom_call.1} parent=31 // pred_region
          %186 = dma.done %s179, 128
        $region36: #{tpu_custom_call.1} parent=31 // pred_fallthru
          _
        %p187 = pneg %p48
        %p188 = pneg %p45
        %p189 = pneg %p69
        %p190 = pneg %p66
        %s191 = sand.u32 %s84, 1
        %s192 = scalar_lea.sflag [#allocation3], %s191
        %s193 = sand.u32 %s84, 1
        %s194 = smul.addr %s193, 8
        %s195 = scalar_lea.vmem [#allocation2], %s194
        %p196 = pneg %p97
        %p197 = pneg %p94
        %p198 = pneg %p125
        %p199 = pneg %p122
        %s200 = sand.u32 %s112, 1
        %s201 = scalar_lea.sflag [#allocation4], %s200
        %s202 = sand.u32 %s112, 1
        %s203 = smul.addr %s202, 8
        %s204 = scalar_lea.vmem [#allocation5], %s203
        %s205 = smul.u32 2, %s25
        %s206 = smul.u32 2, %s25
        %v207 = vld [vmem:[%s182] sm:$0xff]
        %v208 = vld [vmem:[%s0] sm:$0xf]
        %v209 = vld [vmem:[%s1] sm:$0xf]
        %v211 = vcombine.high %v207, %v207
        %vm213 = vcmask 1043456
        %v214 = vsel %vm213, %v207, 0.0
        %v215 = vrot.slane %v214, 4
        %v216 = vadd.f32 %v214, %v215
        %v217 = vrot.slane %v216, 2
        %v218 = vadd.f32 %v216, %v217
        %v219 = vrot.slane %v218, 1
        %v220 = vadd.f32 %v218, %v219
        %v221 = vsel %vm213, %v211, 0.0
        %v222 = vrot.slane %v221, 4
        %v223 = vadd.f32 %v221, %v222
        %v224 = vrot.slane %v223, 2
        %v225 = vadd.f32 %v223, %v224
        %v226 = vrot.slane %v225, 1
        %v227 = vadd.f32 %v225, %v226
        %v228 = vmul.f32 %v220, 0.25
        %v229 = vmul.f32 %v227, 0.25
        %v232 = vcombine.low %v228, %v229
        %v234 = vsub.f32 %v207, %v232
        %v235 = vmul.f32 %v234, %v234
        %v237 = vcombine.high %v235, %v235
        %v239 = vsel %vm213, %v235, 0.0
        %v240 = vrot.slane %v239, 4
        %v241 = vadd.f32 %v239, %v240
        %v242 = vrot.slane %v241, 2
        %v243 = vadd.f32 %v241, %v242
        %v244 = vrot.slane %v243, 1
        %v245 = vadd.f32 %v243, %v244
        %v246 = vsel %vm213, %v237, 0.0
        %v247 = vrot.slane %v246, 4
        %v248 = vadd.f32 %v246, %v247
        %v249 = vrot.slane %v248, 2
        %v250 = vadd.f32 %v248, %v249
        %v251 = vrot.slane %v250, 1
        %v252 = vadd.f32 %v250, %v251
        %v253 = vmul.f32 %v245, 0.25
        %v254 = vmul.f32 %v252, 0.25
        %v255 = vadd.f32 %v253, 1e-05
        %v256 = vadd.f32 %v254, 1e-05
        %v257 = vrsqrt.pop %v255
        %v258 = vrsqrt.pop %v256
        %v261 = vcombine.low %v257, %v258
        %v263 = vmul.f32 %v234, %v261
        %265 = vset.pattern.permute.xlu0 0
        %266 = vperm.xlu0 %265, %v208
        %v267 = vpop.permute.xlu0 %266
        %v269 = vunpack.c.l.s4 839922192
        %v270 = vunpack.c.0.s8 %v269
        %v271 = vlaneseq
        %v272 = vshrl.u32 %v271, 7
        %v273 = vsub.s32 %v270, %v272
        %v274 = vrot.slane %v267, %v273
        %v276 = vmul.f32 %v263, %v274
        %278 = vset.pattern.permute.xlu0 0
        %279 = vperm.xlu0 %278, %v209
        %v280 = vpop.permute.xlu0 %279
        %v282 = vunpack.c.l.s4 839922192
        %v283 = vunpack.c.0.s8 %v282
        %v284 = vlaneseq
        %v285 = vshrl.u32 %v284, 7
        %v286 = vsub.s32 %v283, %v285
        %v287 = vrot.slane %v280, %v286
        %v289 = vadd.f32 %v276, %v287
        %290 = vst [vmem:[%s204] sm:$0xff] %v289
        %s291 = sand.u32 %s112, 1
        %s292 = scalar_lea.sflag [#allocation4], %s291
        %s293 = sand.u32 %s112, 1
        %s294 = smul.addr %s293, 8
        %s295 = scalar_lea.vmem [#allocation5], %s294
        // Predicated region
        $region37: #{tpu_custom_call.1} parent=31 // pred_check
          %p296 = pneg %p122
        $region38: #{tpu_custom_call.1} parent=31 // pred_check_branch
          %298 = sbr.rel (%p296) target = $region40
        $region39: #{tpu_custom_call.1} parent=31 // pred_region
          %s299 = smul.u32 2, %s25
          %s301 = ssub.s32 128, 128
          %302 = vsyncadd %s292, %s301
          %s303 = smul.addr %s24, 2
          %s304 = sadd.s32 %s299, %s303
          %s305 = smul.addr %s304, 64
          %s306 = scalar_lea.hbm %s3, %s305
          %s308 = sshll.u32 %s295, 4
          %s309 = int_to_ptr.vmem [resolvable:$true] %s308
          %311 = dma.vmem_to_hbm [thread:$0]  %s309, 128, %s306, %s292
        $region40: #{tpu_custom_call.1} parent=31 // pred_fallthru
          _
      $region32: #{tpu_custom_call.1} parent=5 // pred_fallthru
        _
      %p312 = scmp.le.s32.totalorder 2, %s15
      // Predicated region
      $region41: #{tpu_custom_call.1} parent=5 // pred_check
        %p313 = pneg %p312
      $region42: #{tpu_custom_call.1} parent=5 // pred_check_branch
        %315 = sbr.rel (%p313) target = $region44
      $region43: #{tpu_custom_call.1} parent=5 // pred_region
        %s316 = ssub.s32 %s15, 2
        // Predicated region
        $region45: #{tpu_custom_call.1} parent=43 // pred_check
          %p317 = pneg %p128
        $region46: #{tpu_custom_call.1} parent=43 // pred_check_branch
          %319 = sbr.rel (%p317) target = $region48
        $region47: #{tpu_custom_call.1} parent=43 // pred_region
          %s320 = sand.u32 %s113, 1
          %s321 = scalar_lea.sflag [#allocation4], %s320
          %s322 = sand.u32 %s113, 1
          %s323 = smul.addr %s322, 8
          %s324 = scalar_lea.vmem [#allocation5], %s323
          %325 = dma.done %s321, 128
        $region48: #{tpu_custom_call.1} parent=43 // pred_fallthru
          _
      $region44: #{tpu_custom_call.1} parent=5 // pred_fallthru
        _
    $region6: #{tpu_custom_call.1} parent=1 // loop_footer
      %s19 = sadd.s32 1, %s15
    $region7: #{tpu_custom_call.1} parent=1 // loop_footer_branch
      %14 = sbr.rel target = $region3
    $region8: #{tpu_custom_call.1} parent=1 // loop_exit
      _
    %326 = vsyncpa [#allocation3], 1
    %s327 = scalar_lea.sflag [#allocation3], 1
    %328 = vsyncpa %s327, 1
    %329 = vsyncpa [#allocation4], 1
    %s330 = scalar_lea.sflag [#allocation4], 1
    %331 = vsyncpa %s330, 1

</llo_original>
